<compile_context>
chip_gen: v6e
topology: v6e:2x2x1
jax: 0.10.0
libtpu: 0.0.40
codegen_flags: <defaults>
</compile_context>

<pallas_src>
import functools

import jax
import jax.numpy as jnp
from jax.experimental import pallas as pl
from jax.experimental.pallas import tpu as pltpu


_MIB = 1 << 20
_VMEM_TILE_BUDGET = 40 * _MIB   # conservative: fits under v7x's 64 MiB physical
_VMEM_LIMIT_CAP = 48 * _MIB     # explicit scoped-VMEM cap, safe on v5e/v6e/v7x


def _gat_row_tile_kernel(adj_ref, a_r_ref, a_l_ref, xp_ref, bias_ref, out_ref,
                         *, approx_recip):
    # Scores for this tile of target rows against all N sources: [tm, N]
    s = a_r_ref[...] + a_l_ref[...]                       # (tm,1) + (1,N) broadcast
    # LeakyReLU(0.2) written as max(s, 0.2*s), fused with the adjacency mask
    # into a single select over the [tm, N] slab (VALU is the hot slot here).
    s = jnp.where(adj_ref[...] != 0,
                  jnp.maximum(s, 0.2 * s),
                  jnp.float32(-1e30))
    # Row softmax over sources. Self loops (forced in the wrapper) guarantee
    # >= 1 unmasked entry per row, so s_max is finite and masked entries
    # underflow exp() to exactly 0 -- no post-exp re-mask needed.
    s_max = jnp.max(s, axis=-1, keepdims=True)            # [tm, 1]
    p = jnp.exp(s - s_max)                                # [tm, N] un-normalized
    denom = jnp.sum(p, axis=-1, keepdims=True)            # [tm, 1] (f32)
    # Deferred normalization: aggregate the *un-normalized* weights on the MXU
    # (p in [0,1], cast to xp's dtype; f32 accumulation), then scale the small
    # [tm, c_pad] result -- tm*c_pad multiplies instead of tm*N.
    out = jnp.dot(p.astype(xp_ref.dtype), xp_ref[...],
                  preferred_element_type=jnp.float32)     # [tm, c_pad]
    out = out * pl.reciprocal(denom, approx=approx_recip)  # EUP slot when approx
    out_ref[...] = jnp.maximum(out + bias_ref[...], 0.0)  # bias + final ReLU


def _vmem_estimate(tm, n, c_pad, agg_bytes):
    """Rough per-step VMEM bytes for tile size tm."""
    adj = 2 * tm * n                    # double-buffered int8 adjacency stream
    slab = 3 * tm * n * 4               # f32 score temporaries (s / p / exp)
    xp = n * c_pad * agg_bytes          # resident projection (single-buffered)
    out = 2 * tm * c_pad * 4            # double-buffered output tile
    misc = 2 * tm * 4 + n * 4 + c_pad * 4
    return adj + slab + xp + out + misc


def _pick_tm(n, tm_req, c_pad, agg_bytes, budget_bytes):
    """Largest row tile <= tm_req that divides n, is a multiple of 32 (int8
    sublane packing), fits the VMEM budget, and (preferably) leaves >= 2 grid
    steps so both v7x TensorCores get work."""
    cands = [t for t in range(32, n, 32) if n % t == 0] + [n]
    fitting = [t for t in cands if _vmem_estimate(t, n, c_pad, agg_bytes) <= budget_bytes]
    if not fitting:
        fitting = [min(cands)]
    multi = [t for t in fitting if n // t >= 2]
    pool = multi if multi else fitting
    return max([t for t in pool if t <= tm_req], default=min(pool))


def stand_gat1_forward(x, adj_i8, w_t, att_l, att_r, bias, *,
                       tm=256, agg_dtype=jnp.bfloat16, approx_recip=True,
                       add_self_loops=True):
    """StandGAT1 forward: single-head GATConv (+bias) followed by ReLU.

    x      : [N, F] f32          node features
    adj_i8 : [N, N] int8         adj[i, j] != 0 iff edge j -> i
    w_t    : [F, C] f32          lin_l weight, pre-transposed (torch stores [C, F])
    att_l  : [1, C] f32          source attention vector
    att_r  : [1, C] f32          target attention vector
    bias   : [1, C] f32
    returns [N, C] f32
    """
    N, _ = x.shape
    C = w_t.shape[1]

    # Lane-dense output: pad C up to a multiple of 128 (128 exactly for small C;
    # do NOT chase wider MXU tiles -- the matmul is not the binding slot here).
    c_pad = ((C + 127) // 128) * 128
    agg_bytes = jnp.dtype(agg_dtype).itemsize

    tm = _pick_tm(N, min(tm, N), c_pad, agg_bytes, _VMEM_TILE_BUDGET)
    assert N % tm == 0 and (tm == N or tm % 32 == 0), (
        "tm must divide N and be a multiple of 32 (int8 sublane packing)")

    # Self loops (GATConv: remove_self_loops + add_self_loops). Also guarantees
    # every target row has at least one unmasked entry (denom > 0).
    if add_self_loops:
        diag = (jax.lax.broadcasted_iota(jnp.int32, (N, N), 0)
                == jax.lax.broadcasted_iota(jnp.int32, (N, N), 1))
        adj_i8 = jnp.maximum(adj_i8, diag.astype(adj_i8.dtype))

    # --- hoisted prologue (tiny, plain XLA): projection + attention logits ---
    # Pad the parameters once so the projection lands directly in the padded,
    # lane-dense layout (no extra [N, c_pad] zeros+set round trip).
    w_t_pad = jnp.pad(w_t, ((0, 0), (0, c_pad - C)))
    att_l_pad = jnp.pad(att_l, ((0, 0), (0, c_pad - C)))
    att_r_pad = jnp.pad(att_r, ((0, 0), (0, c_pad - C)))
    bias_pad = jnp.pad(bias, ((0, 0), (0, c_pad - C)))

    xp_f32 = jnp.dot(x, w_t_pad, preferred_element_type=jnp.float32)   # [N, c_pad]
    a_r = jnp.sum(xp_f32 * att_r_pad, axis=-1, keepdims=True)          # [N, 1] target term
    a_l = jnp.sum(xp_f32 * att_l_pad, axis=-1, keepdims=True).T        # [1, N] source term
    xp_pad = xp_f32.astype(agg_dtype)                                  # [N, c_pad]

    est = _vmem_estimate(tm, N, c_pad, agg_bytes)
    vmem_limit = int(min(max(32 * _MIB, int(est * 1.5)), _VMEM_LIMIT_CAP))

    kernel = functools.partial(_gat_row_tile_kernel, approx_recip=approx_recip)
    out_pad = pl.pallas_call(
        kernel,
        out_shape=jax.ShapeDtypeStruct((N, c_pad), jnp.float32),
        grid_spec=pltpu.PrefetchScalarGridSpec(
            num_scalar_prefetch=0,
            grid=(N // tm,),
            in_specs=[
                # adjacency rows: the only large streamed operand (int8,
                # double-buffered by default; bump to pl.Buffered(3) only if
                # profiling shows exposed DMA).
                pl.BlockSpec((tm, N), lambda i: (i, 0)),
                # alpha_r per target row (streamed, tiny)
                pl.BlockSpec((tm, 1), lambda i: (i, 0)),
                # grid-invariant operands: single-buffered (constant index_map,
                # double-buffering would only waste VMEM -- matters most on v7x).
                pl.BlockSpec((1, N), lambda i: (0, 0),
                             pipeline_mode=pl.Buffered(1)),
                pl.BlockSpec((N, c_pad), lambda i: (0, 0),
                             pipeline_mode=pl.Buffered(1)),
                pl.BlockSpec((1, c_pad), lambda i: (0, 0),
                             pipeline_mode=pl.Buffered(1)),
            ],
            out_specs=pl.BlockSpec((tm, c_pad), lambda i: (i, 0)),
        ),
        compiler_params=pltpu.CompilerParams(
            # Independent target-row tiles: pays on v7x (2 TensorCores);
            # neutral on single-TC v5e/v6e.
            dimension_semantics=("parallel",),
            vmem_limit_bytes=vmem_limit,
        ),
    )(adj_i8, a_r, a_l, xp_pad, bias_pad)
    return out_pad[:, :C]


def glorot(key, shape):
    # matches PyG glorot: U(-a, a), a = sqrt(6 / (fan_in + fan_out))
    fan_in, fan_out = shape[-2], shape[-1]
    a = (6.0 / (fan_in + fan_out)) ** 0.5
    return jax.random.uniform(key, shape, jnp.float32, minval=-a, maxval=a)


def reference_forward(x, adj, w_t, att_l, att_r, bias):
    xp = x @ w_t
    a_l = jnp.sum(xp * att_l, axis=-1)
    a_r = jnp.sum(xp * att_r, axis=-1)
    s = a_r[:, None] + a_l[None, :]
    s = jnp.where(s > 0, s, 0.2 * s)
    mask = adj != 0
    s = jnp.where(mask, s, -1e30)
    p = jnp.where(mask, jnp.exp(s - jnp.max(s, axis=-1, keepdims=True)), 0.0)
    attn = p / jnp.sum(p, axis=-1, keepdims=True)
    return jnp.maximum(attn @ xp + bias, 0.0)


if __name__ == "__main__":
    N, F, C = 256, 32, 16    # nodes, nfeat, nclass (heads=1) -> grid of 2 row tiles

    key = jax.random.PRNGKey(0)
    k_x, k_w, k_al, k_ar, k_adj = jax.random.split(key, 5)

    # inputs
    x = jax.random.normal(k_x, (N, F), jnp.float32)
    # random sparse-ish adjacency (edge j -> i), self loops forced, stored as int8
    adj = jax.random.uniform(k_adj, (N, N)) < 0.05
    adj = jnp.logical_or(adj, jnp.eye(N, dtype=bool))
    adj_i8 = adj.astype(jnp.int8)

    # parameters (GATConv.__init__ with heads=1, concat=True, bias=True)
    w = glorot(k_w, (C, F))                 # torch Linear weight [out, in]
    w_t = w.T                               # [F, C] for the kernel
    att_l = glorot(k_al, (1, C))
    att_r = glorot(k_ar, (1, C))
    bias = jnp.zeros((1, C), jnp.float32)   # zeros(bias)

    fwd = jax.jit(stand_gat1_forward,
                  static_argnames=("tm", "agg_dtype", "approx_recip",
                                   "add_self_loops"))

    ref = reference_forward(x, adj_i8, w_t, att_l, att_r, bias)

    # Fast path: bf16 MXU aggregation + approx reciprocal (v6e/v7x recommendation);
    # tolerance relaxed accordingly vs the f32 reference.
    out = jax.block_until_ready(fwd(x, adj_i8, w_t, att_l, att_r, bias))
    assert out.shape == (N, C)
    assert jnp.allclose(out, ref, atol=5e-2, rtol=5e-2), "bf16 path mismatch vs reference"

    # Exact-path sanity check: f32 aggregation + exact reciprocal matches tightly.
    out_f32 = jax.block_until_ready(
        fwd(x, adj_i8, w_t, att_l, att_r, bias,
            agg_dtype=jnp.float32, approx_recip=False))
    assert jnp.allclose(out_f32, ref, atol=1e-4, rtol=1e-4), "f32 path mismatch vs reference"

    print("KERNEL_OK")
</pallas_src>

<mosaic_0001>
module attributes {stable_mosaic.version = 11 : i64} {
  func.func @_gat_row_tile_kernel(%arg0: i32, %arg1: memref<128x256xi8, #tpu.memory_space<vmem>>, %arg2: memref<128x1xf32, #tpu.memory_space<vmem>>, %arg3: memref<1x256xf32, #tpu.memory_space<vmem>>, %arg4: memref<256x128xbf16, #tpu.memory_space<vmem>>, %arg5: memref<1x128xf32, #tpu.memory_space<vmem>>, %arg6: memref<128x128xf32, #tpu.memory_space<vmem>>) attributes {dimension_semantics = [#tpu.dimension_semantics<parallel>], iteration_bounds = array<i64: 2>, scalar_prefetch = 0 : i64, scratch_operands = 0 : i64, tpu.core_type = #tpu.core_type<tc>, window_params = [{transform_indices = @transform_0, window_bounds = array<i64: 128, 256>}, {transform_indices = @transform_1, window_bounds = array<i64: 128, 1>}, {pipeline_mode = #tpu.pipeline_mode<synchronous>, transform_indices = @transform_2, window_bounds = array<i64: 1, 256>}, {pipeline_mode = #tpu.pipeline_mode<synchronous>, transform_indices = @transform_3, window_bounds = array<i64: 256, 128>}, {pipeline_mode = #tpu.pipeline_mode<synchronous>, transform_indices = @transform_4, window_bounds = array<i64: 1, 128>}, {transform_indices = @transform_5, window_bounds = array<i64: 128, 128>}]} {
    %c0 = arith.constant 0 : index
    %c0_0 = arith.constant 0 : index
    %0 = vector.load %arg2[%c0, %c0_0] : memref<128x1xf32, #tpu.memory_space<vmem>>, vector<128x1xf32>
    %c0_1 = arith.constant 0 : index
    %c0_2 = arith.constant 0 : index
    %1 = vector.load %arg3[%c0_1, %c0_2] : memref<1x256xf32, #tpu.memory_space<vmem>>, vector<1x256xf32>
    %2 = vector.broadcast %0 : vector<128x1xf32> to vector<128x256xf32>
    %3 = vector.broadcast %1 : vector<1x256xf32> to vector<128x256xf32>
    %4 = arith.addf %2, %3 : vector<128x256xf32>
    %c0_3 = arith.constant 0 : index
    %c0_4 = arith.constant 0 : index
    %5 = vector.load %arg1[%c0_3, %c0_4] : memref<128x256xi8, #tpu.memory_space<vmem>>, vector<128x256xi8>
    %c0_i8 = arith.constant 0 : i8
    %6 = vector.broadcast %c0_i8 : i8 to vector<128x256xi8>
    %7 = arith.cmpi ne, %5, %6 : vector<128x256xi8>
    %cst = arith.constant 2.000000e-01 : f32
    %8 = vector.broadcast %cst : f32 to vector<128x256xf32>
    %9 = arith.mulf %8, %4 : vector<128x256xf32>
    %10 = arith.maximumf %4, %9 : vector<128x256xf32>
    %cst_5 = arith.constant -1.000000e+30 : f32
    %11 = vector.broadcast %cst_5 : f32 to vector<128x256xf32>
    %12 = arith.select %7, %10, %11 : vector<128x256xi1>, vector<128x256xf32>
    %cst_6 = arith.constant dense<0xFF800000> : vector<128xf32>
    %13 = vector.multi_reduction <maximumf>, %12, %cst_6 [1] : vector<128x256xf32> to vector<128xf32>
    %14 = vector.shape_cast %13 : vector<128xf32> to vector<128x1xf32>
    %15 = vector.broadcast %14 : vector<128x1xf32> to vector<128x256xf32>
    %16 = arith.subf %12, %15 : vector<128x256xf32>
    %17 = math.exp %16 : vector<128x256xf32>
    %cst_7 = arith.constant dense<0.000000e+00> : vector<128xf32>
    %18 = vector.multi_reduction <add>, %17, %cst_7 [1] : vector<128x256xf32> to vector<128xf32>
    %19 = vector.shape_cast %18 : vector<128xf32> to vector<128x1xf32>
    %20 = arith.truncf %17 : vector<128x256xf32> to vector<128x256xbf16>
    %c0_8 = arith.constant 0 : index
    %c0_9 = arith.constant 0 : index
    %21 = vector.load %arg4[%c0_8, %c0_9] : memref<256x128xbf16, #tpu.memory_space<vmem>>, vector<256x128xbf16>
    %cst_10 = arith.constant dense<0.000000e+00> : vector<128x128xf32>
    %22 = tpu.matmul %20, %21, %cst_10 {dimension_numbers = #tpu.dot_dimension_numbers<[1], [0], [0], [1], [0, 0, 1, 1], [], []>} : vector<128x256xbf16>, vector<256x128xbf16>, vector<128x128xf32> -> vector<128x128xf32>
    %23 = tpu.reciprocal %19 {approx = true} : vector<128x1xf32> -> vector<128x1xf32>
    %24 = vector.broadcast %23 : vector<128x1xf32> to vector<128x128xf32>
    %25 = arith.mulf %22, %24 : vector<128x128xf32>
    %c0_11 = arith.constant 0 : index
    %c0_12 = arith.constant 0 : index
    %26 = vector.load %arg5[%c0_11, %c0_12] : memref<1x128xf32, #tpu.memory_space<vmem>>, vector<1x128xf32>
    %27 = vector.broadcast %26 : vector<1x128xf32> to vector<128x128xf32>
    %28 = arith.addf %25, %27 : vector<128x128xf32>
    %cst_13 = arith.constant 0.000000e+00 : f32
    %29 = vector.broadcast %cst_13 : f32 to vector<128x128xf32>
    %30 = arith.maximumf %28, %29 : vector<128x128xf32>
    %c0_14 = arith.constant 0 : index
    %c0_15 = arith.constant 0 : index
    %31 = vector.load %arg6[%c0_14, %c0_15] : memref<128x128xf32, #tpu.memory_space<vmem>>, vector<128x128xf32>
    tpu.vector_store %arg6[%c0_14, %c0_15], %30 {strides = array<i32>} : memref<128x128xf32, #tpu.memory_space<vmem>>, vector<128x128xf32>,
    return
  }
  func.func @transform_0(%arg0: i32) -> (i32, i32) {
    %c0_i32 = arith.constant 0 : i32
    %c0_i32_0 = arith.constant 0 : i32
    return %arg0, %c0_i32 : i32, i32
  }
  func.func @transform_1(%arg0: i32) -> (i32, i32) {
    %c0_i32 = arith.constant 0 : i32
    %c0_i32_0 = arith.constant 0 : i32
    return %arg0, %c0_i32 : i32, i32
  }
  func.func @transform_2(%arg0: i32) -> (i32, i32) {
    %c0_i32 = arith.constant 0 : i32
    %c0_i32_0 = arith.constant 0 : i32
    %c0_i32_1 = arith.constant 0 : i32
    return %c0_i32, %c0_i32_0 : i32, i32
  }
  func.func @transform_3(%arg0: i32) -> (i32, i32) {
    %c0_i32 = arith.constant 0 : i32
    %c0_i32_0 = arith.constant 0 : i32
    %c0_i32_1 = arith.constant 0 : i32
    return %c0_i32, %c0_i32_0 : i32, i32
  }
  func.func @transform_4(%arg0: i32) -> (i32, i32) {
    %c0_i32 = arith.constant 0 : i32
    %c0_i32_0 = arith.constant 0 : i32
    %c0_i32_1 = arith.constant 0 : i32
    return %c0_i32, %c0_i32_0 : i32, i32
  }
  func.func @transform_5(%arg0: i32) -> (i32, i32) {
    %c0_i32 = arith.constant 0 : i32
    %c0_i32_0 = arith.constant 0 : i32
    return %arg0, %c0_i32 : i32, i32
  }
}

</mosaic_0001>

<llo_original>
// kernel: stand_gat1_forward.1
$region0: #{stand_gat1_forward.1}
  #allocation0 [shape = 'u32[]', space=smem, size = 0x4, offset = 0x4, fixed_abs, tag = 'smem constant byte address 0x4 - core index']
  #allocation1 [shape = 'u32[144,128]{1,0:T(1,128)}', space=vmem, size = 0x12000, scoped, tag = 'internal scratch']
  %s0 = inlined_call_operand.vmem [shape: s8[256,256], index: 0, kind: input, shape index: {}]
  %s1 = inlined_call_operand.vmem [shape: f32[256,1], index: 1, kind: input, shape index: {}]
  %s2 = inlined_call_operand.vmem [shape: f32[1,256], index: 2, kind: input, shape index: {}]
  %s3 = inlined_call_operand.vmem [shape: bf16[256,128], index: 3, kind: input, shape index: {}]
  %s4 = inlined_call_operand.vmem [shape: f32[1,128], index: 4, kind: input, shape index: {}]
  %s5 = inlined_call_operand.vmem [shape: f32[256,128], index: 5, kind: output, shape index: {}]
  %s6 = sld [smem:[#allocation0]]
  $region53: #{stand_gat1_forward.1} parent=0
    _
  %s8 = ssub.s32 1, %s6
  %s9 = scalar_select 0, %s8, %s6
  loop: start=0, step=1, limit=4
  $region2: #{stand_gat1_forward.1} parent=0 // loop_pre_header
    _
  $region3: #{stand_gat1_forward.1} parent=0 // loop_header
    %s11 = sphi 0, %s15
    %p12 = scmp.ge.s32.totalorder %s11, 4
    %s21 = sphi 0, %s23
    %s24 = sphi 0, %s21
    %s25 = sphi 0, %s24
    %s41 = sphi 0, %s25
    %s47 = sphi 0, %s49
    %s50 = sphi 0, %s47
    %s51 = sphi 0, %s50
    %s67 = sphi 0, %s51
    %s71 = sphi 0, %s71
    %s73 = sphi 0, %s71
    %s74 = sphi 0, %s73
    %s88 = sphi 0, %s74
    %s92 = sphi 0, %s92
    %s94 = sphi 0, %s92
    %s95 = sphi 0, %s94
    %s109 = sphi 0, %s95
    %s113 = sphi 0, %s113
    %s115 = sphi 0, %s113
    %s116 = sphi 0, %s115
    %s130 = sphi 0, %s116
    %s136 = sphi 0, %s138
    %s139 = sphi 0, %s136
    %s140 = sphi 0, %s139
    %s156 = sphi 0, %s140
  $region4: #{stand_gat1_forward.1} parent=0 // loop_header_branch
    %14 = sbr.rel (%p12) target = $region8
  $region5: #{stand_gat1_forward.1} parent=0 // loop_body
    %s16 = ssub.s32 %s11, 1
    %s17 = ssub.s32 %s11, 2
    %s18 = sadd.s32 %s11, 1
    %s19 = ssub.s32 %s11, %s18
    %p20 = scmp.eq.s32.totalorder %s19, 0
    %s22 = sadd.s32 %s21, 1
    %s23 = scalar_select %p20, %s21, %s22
    %p26 = pneg %p20
    %p27 = scmp.eq.s32.totalorder %s11, 1
    %p28 = por %p26, %p27
    %p29 = scmp.ne.s32.totalorder %s21, %s24
    %p30 = scmp.eq.s32.totalorder %s11, 0
    %p31 = por %p29, %p30
    %p32 = scmp.ne.s32.totalorder %s21, %s24
    %p33 = scmp.eq.s32.totalorder %s16, 1
    %p34 = por %p32, %p33
    %p35 = scmp.ne.s32.totalorder %s24, %s25
    %p36 = scmp.eq.s32.totalorder %s16, 0
    %p37 = por %p35, %p36
    %p38 = scmp.ne.s32.totalorder %s24, %s25
    %p39 = scmp.eq.s32.totalorder %s17, 1
    %p40 = por %p38, %p39
    %p42 = scmp.ne.s32.totalorder %s25, %s41
    %p43 = scmp.eq.s32.totalorder %s17, 0
    %p44 = por %p42, %p43
    %s45 = ssub.s32 %s11, %s18
    %p46 = scmp.eq.s32.totalorder %s45, 0
    %s48 = sadd.s32 %s47, 1
    %s49 = scalar_select %p46, %s47, %s48
    %p52 = pneg %p46
    %p53 = scmp.eq.s32.totalorder %s11, 1
    %p54 = por %p52, %p53
    %p55 = scmp.ne.s32.totalorder %s47, %s50
    %p56 = scmp.eq.s32.totalorder %s11, 0
    %p57 = por %p55, %p56
    %p58 = scmp.ne.s32.totalorder %s47, %s50
    %p59 = scmp.eq.s32.totalorder %s16, 1
    %p60 = por %p58, %p59
    %p61 = scmp.ne.s32.totalorder %s50, %s51
    %p62 = scmp.eq.s32.totalorder %s16, 0
    %p63 = por %p61, %p62
    %p64 = scmp.ne.s32.totalorder %s50, %s51
    %p65 = scmp.eq.s32.totalorder %s17, 1
    %p66 = por %p64, %p65
    %p68 = scmp.ne.s32.totalorder %s51, %s67
    %p69 = scmp.eq.s32.totalorder %s17, 0
    %p70 = por %p68, %p69
    %s72 = sadd.s32 %s71, 1
    %p75 = scmp.eq.s32.totalorder %s11, 1
    %p76 = scmp.ne.s32.totalorder %s71, %s73
    %p77 = scmp.eq.s32.totalorder %s11, 0
    %p78 = por %p76, %p77
    %p79 = scmp.ne.s32.totalorder %s71, %s73
    %p80 = scmp.eq.s32.totalorder %s16, 1
    %p81 = por %p79, %p80
    %p82 = scmp.ne.s32.totalorder %s73, %s74
    %p83 = scmp.eq.s32.totalorder %s16, 0
    %p84 = por %p82, %p83
    %p85 = scmp.ne.s32.totalorder %s73, %s74
    %p86 = scmp.eq.s32.totalorder %s17, 1
    %p87 = por %p85, %p86
    %p89 = scmp.ne.s32.totalorder %s74, %s88
    %p90 = scmp.eq.s32.totalorder %s17, 0
    %p91 = por %p89, %p90
    %s93 = sadd.s32 %s92, 1
    %p96 = scmp.eq.s32.totalorder %s11, 1
    %p97 = scmp.ne.s32.totalorder %s92, %s94
    %p98 = scmp.eq.s32.totalorder %s11, 0
    %p99 = por %p97, %p98
    %p100 = scmp.ne.s32.totalorder %s92, %s94
    %p101 = scmp.eq.s32.totalorder %s16, 1
    %p102 = por %p100, %p101
    %p103 = scmp.ne.s32.totalorder %s94, %s95
    %p104 = scmp.eq.s32.totalorder %s16, 0
    %p105 = por %p103, %p104
    %p106 = scmp.ne.s32.totalorder %s94, %s95
    %p107 = scmp.eq.s32.totalorder %s17, 1
    %p108 = por %p106, %p107
    %p110 = scmp.ne.s32.totalorder %s95, %s109
    %p111 = scmp.eq.s32.totalorder %s17, 0
    %p112 = por %p110, %p111
    %s114 = sadd.s32 %s113, 1
    %p117 = scmp.eq.s32.totalorder %s11, 1
    %p118 = scmp.ne.s32.totalorder %s113, %s115
    %p119 = scmp.eq.s32.totalorder %s11, 0
    %p120 = por %p118, %p119
    %p121 = scmp.ne.s32.totalorder %s113, %s115
    %p122 = scmp.eq.s32.totalorder %s16, 1
    %p123 = por %p121, %p122
    %p124 = scmp.ne.s32.totalorder %s115, %s116
    %p125 = scmp.eq.s32.totalorder %s16, 0
    %p126 = por %p124, %p125
    %p127 = scmp.ne.s32.totalorder %s115, %s116
    %p128 = scmp.eq.s32.totalorder %s17, 1
    %p129 = por %p127, %p128
    %p131 = scmp.ne.s32.totalorder %s116, %s130
    %p132 = scmp.eq.s32.totalorder %s17, 0
    %p133 = por %p131, %p132
    %s134 = ssub.s32 %s11, %s18
    %p135 = scmp.eq.s32.totalorder %s134, 0
    %s137 = sadd.s32 %s136, 1
    %s138 = scalar_select %p135, %s136, %s137
    %p141 = pneg %p135
    %p142 = scmp.eq.s32.totalorder %s11, 1
    %p143 = por %p141, %p142
    %p144 = scmp.ne.s32.totalorder %s136, %s139
    %p145 = scmp.eq.s32.totalorder %s11, 0
    %p146 = por %p144, %p145
    %p147 = scmp.ne.s32.totalorder %s136, %s139
    %p148 = scmp.eq.s32.totalorder %s16, 1
    %p149 = por %p147, %p148
    %p150 = scmp.ne.s32.totalorder %s139, %s140
    %p151 = scmp.eq.s32.totalorder %s16, 0
    %p152 = por %p150, %p151
    %p153 = scmp.ne.s32.totalorder %s139, %s140
    %p154 = scmp.eq.s32.totalorder %s17, 1
    %p155 = por %p153, %p154
    %p157 = scmp.ne.s32.totalorder %s140, %s156
    %p158 = scmp.eq.s32.totalorder %s17, 0
    %p159 = por %p157, %p158
    %p160 = scmp.le.s32.totalorder 1, %s11
    %p161 = scmp.lt.s32.totalorder %s11, 3
    %p162 = pnand %p160, %p161
    %p163 = pneg %p162
    // Predicated region
    $region9: #{stand_gat1_forward.1} parent=5 // pred_check
      _
    $region10: #{stand_gat1_forward.1} parent=5 // pred_check_branch
      %165 = sbr.rel (%p162) target = $region12
    $region11: #{stand_gat1_forward.1} parent=5 // pred_region
      %s166 = ssub.s32 %s11, 1
      // Predicated region
      $region13: #{stand_gat1_forward.1} parent=11 // pred_check
        %p167 = pneg %p84
      $region14: #{stand_gat1_forward.1} parent=11 // pred_check_branch
        %169 = sbr.rel (%p167) target = $region16
      $region15: #{stand_gat1_forward.1} parent=11 // pred_region
        _
      $region16: #{stand_gat1_forward.1} parent=11 // pred_fallthru
        _
      // Predicated region
      $region17: #{stand_gat1_forward.1} parent=11 // pred_check
        %p170 = pneg %p105
      $region18: #{stand_gat1_forward.1} parent=11 // pred_check_branch
        %172 = sbr.rel (%p170) target = $region20
      $region19: #{stand_gat1_forward.1} parent=11 // pred_region
        _
      $region20: #{stand_gat1_forward.1} parent=11 // pred_fallthru
        _
      // Predicated region
      $region21: #{stand_gat1_forward.1} parent=11 // pred_check
        %p173 = pneg %p126
      $region22: #{stand_gat1_forward.1} parent=11 // pred_check_branch
        %175 = sbr.rel (%p173) target = $region24
      $region23: #{stand_gat1_forward.1} parent=11 // pred_region
        _
      $region24: #{stand_gat1_forward.1} parent=11 // pred_fallthru
        _
    $region12: #{stand_gat1_forward.1} parent=5 // pred_fallthru
      _
    %p176 = scmp.lt.s32.totalorder %s11, 2
    // Predicated region
    $region25: #{stand_gat1_forward.1} parent=5 // pred_check
      %p177 = pneg %p176
    $region26: #{stand_gat1_forward.1} parent=5 // pred_check_branch
      %179 = sbr.rel (%p177) target = $region28
    $region27: #{stand_gat1_forward.1} parent=5 // pred_region
      // Predicated region
      $region29: #{stand_gat1_forward.1} parent=27 // pred_check
        %p180 = pneg %p31
      $region30: #{stand_gat1_forward.1} parent=27 // pred_check_branch
        %182 = sbr.rel (%p180) target = $region32
      $region31: #{stand_gat1_forward.1} parent=27 // pred_region
        %s183 = smul.u32 4, %s11
        %p184 = scmp.lt.s32.totalorder %s183, 7
        %s185 = scalar_select %p184, %s183, 7
        %s186 = smul.addr %s185, 2
        %s187 = smul.addr %s186, 8
        %s188 = scalar_lea.vmem %s0, %s187
        %s189 = smul.u32 4, %s11
      $region32: #{stand_gat1_forward.1} parent=27 // pred_fallthru
        _
      // Predicated region
      $region33: #{stand_gat1_forward.1} parent=27 // pred_check
        %p190 = pneg %p57
      $region34: #{stand_gat1_forward.1} parent=27 // pred_check_branch
        %192 = sbr.rel (%p190) target = $region36
      $region35: #{stand_gat1_forward.1} parent=27 // pred_region
        %s193 = smul.u32 16, %s11
        %p194 = scmp.lt.s32.totalorder %s193, 31
        %s195 = scalar_select %p194, %s193, 31
        %s196 = smul.addr %s195, 8
        %s197 = scalar_lea.vmem %s1, %s196
        %s198 = smul.u32 16, %s11
      $region36: #{stand_gat1_forward.1} parent=27 // pred_fallthru
        _
    $region28: #{stand_gat1_forward.1} parent=5 // pred_fallthru
      _
    %p199 = scmp.le.s32.totalorder 1, %s11
    %p200 = scmp.lt.s32.totalorder %s11, 3
    %p201 = pnand %p199, %p200
    %p202 = pneg %p201
    // Predicated region
    $region37: #{stand_gat1_forward.1} parent=5 // pred_check
      _
    $region38: #{stand_gat1_forward.1} parent=5 // pred_check_branch
      %204 = sbr.rel (%p201) target = $region40
    $region39: #{stand_gat1_forward.1} parent=5 // pred_region
      %s205 = ssub.s32 %s11, 1
      %s206 = smul.u32 4, %s16
      %p207 = scmp.lt.s32.totalorder %s206, 7
      %s208 = scalar_select %p207, %s206, 7
      %s209 = smul.addr %s208, 2
      %s210 = smul.addr %s209, 8
      %s211 = scalar_lea.vmem %s0, %s210
      %p212 = pneg %p37
      %p213 = pneg %p34
      %s214 = smul.u32 16, %s16
      %p215 = scmp.lt.s32.totalorder %s214, 31
      %s216 = scalar_select %p215, %s214, 31
      %s217 = smul.addr %s216, 8
      %s218 = scalar_lea.vmem %s1, %s217
      %p219 = pneg %p63
      %p220 = pneg %p60
      %p221 = pneg %p84
      %p222 = pneg %p81
      %p223 = pneg %p105
      %p224 = pneg %p102
      %p225 = pneg %p126
      %p226 = pneg %p123
      %p227 = pneg %p152
      %p228 = pneg %p149
      %s229 = smul.u32 16, %s16
      %p230 = scmp.lt.s32.totalorder %s229, 31
      %s231 = scalar_select %p230, %s229, 31
      %s232 = smul.addr %s231, 8
      %s233 = scalar_lea.vmem %s5, %s232
      %s234 = smul.u32 4, %s16
      %p235 = scmp.lt.s32.totalorder %s234, 7
      %s236 = scalar_select %p235, %s234, 7
      %s237 = smul.addr %s236, 2
      %s238 = smul.addr %s237, 8
      %s239 = scalar_lea.vmem %s0, %s238
      %s240 = smul.u32 4, %s16
      %s241 = smul.u32 16, %s16
      %p242 = scmp.lt.s32.totalorder %s241, 31
      %s243 = scalar_select %p242, %s241, 31
      %s244 = smul.addr %s243, 8
      %s245 = scalar_lea.vmem %s1, %s244
      %s246 = smul.u32 16, %s16
      %s247 = smul.u32 16, %s16
      %p248 = scmp.lt.s32.totalorder %s247, 31
      %s249 = scalar_select %p248, %s247, 31
      %s250 = smul.addr %s249, 8
      %s251 = scalar_lea.vmem %s5, %s250
      %s252 = smul.u32 16, %s16
      %v256 = vld [vmem:[%s245] sm:$0xff]
      %v257 = vld [vmem:[%s245 + $0x8] sm:$0xff]
      %v258 = vld [vmem:[%s245 + $0x10] sm:$0xff]
      %v259 = vld [vmem:[%s245 + $0x18] sm:$0xff]
      %v260 = vld [vmem:[%s245 + $0x20] sm:$0xff]
      %v261 = vld [vmem:[%s245 + $0x28] sm:$0xff]
      %v262 = vld [vmem:[%s245 + $0x30] sm:$0xff]
      %v263 = vld [vmem:[%s245 + $0x38] sm:$0xff]
      %v264 = vld [vmem:[%s245 + $0x40] sm:$0xff]
      %v265 = vld [vmem:[%s245 + $0x48] sm:$0xff]
      %v266 = vld [vmem:[%s245 + $0x50] sm:$0xff]
      %v267 = vld [vmem:[%s245 + $0x58] sm:$0xff]
      %v268 = vld [vmem:[%s245 + $0x60] sm:$0xff]
      %v269 = vld [vmem:[%s245 + $0x68] sm:$0xff]
      %v270 = vld [vmem:[%s245 + $0x70] sm:$0xff]
      %v271 = vld [vmem:[%s245 + $0x78] sm:$0xff]
      %v272 = vld [vmem:[%s2] sm:$0x3]
      %274 = vset.pattern.permute.xlu0 0
      %275 = vperm.xlu0 %274, %v256
      %v276 = vpop.permute.xlu0 %275
      %279 = vset.pattern.permute.xlu0 0
      %280 = vperm.xlu0 %279, %v257
      %v281 = vpop.permute.xlu0 %280
      %284 = vset.pattern.permute.xlu0 0
      %285 = vperm.xlu0 %284, %v258
      %v286 = vpop.permute.xlu0 %285
      %289 = vset.pattern.permute.xlu0 0
      %290 = vperm.xlu0 %289, %v259
      %v291 = vpop.permute.xlu0 %290
      %294 = vset.pattern.permute.xlu0 0
      %295 = vperm.xlu0 %294, %v260
      %v296 = vpop.permute.xlu0 %295
      %299 = vset.pattern.permute.xlu0 0
      %300 = vperm.xlu0 %299, %v261
      %v301 = vpop.permute.xlu0 %300
      %304 = vset.pattern.permute.xlu0 0
      %305 = vperm.xlu0 %304, %v262
      %v306 = vpop.permute.xlu0 %305
      %309 = vset.pattern.permute.xlu0 0
      %310 = vperm.xlu0 %309, %v263
      %v311 = vpop.permute.xlu0 %310
      %314 = vset.pattern.permute.xlu0 0
      %315 = vperm.xlu0 %314, %v264
      %v316 = vpop.permute.xlu0 %315
      %319 = vset.pattern.permute.xlu0 0
      %320 = vperm.xlu0 %319, %v265
      %v321 = vpop.permute.xlu0 %320
      %324 = vset.pattern.permute.xlu0 0
      %325 = vperm.xlu0 %324, %v266
      %v326 = vpop.permute.xlu0 %325
      %329 = vset.pattern.permute.xlu0 0
      %330 = vperm.xlu0 %329, %v267
      %v331 = vpop.permute.xlu0 %330
      %334 = vset.pattern.permute.xlu0 0
      %335 = vperm.xlu0 %334, %v268
      %v336 = vpop.permute.xlu0 %335
      %339 = vset.pattern.permute.xlu0 0
      %340 = vperm.xlu0 %339, %v269
      %v341 = vpop.permute.xlu0 %340
      %344 = vset.pattern.permute.xlu0 0
      %345 = vperm.xlu0 %344, %v270
      %v346 = vpop.permute.xlu0 %345
      %349 = vset.pattern.permute.xlu0 0
      %350 = vperm.xlu0 %349, %v271
      %v351 = vpop.permute.xlu0 %350
      %v354 = vlaneseq
      %v355 = vshrl.u32 %v354, 7
      %v356 = vsub.s32 0, %v355
      %v357 = vrot.slane %v272, %v356
      %v358 = vlaneseq
      %v359 = vshrl.u32 %v358, 7
      %v360 = vsub.s32 1, %v359
      %v361 = vrot.slane %v272, %v360
      %v364 = vadd.f32 %v276, %v357
      %v365 = vadd.f32 %v276, %v361
      %v366 = vadd.f32 %v281, %v357
      %v367 = vadd.f32 %v281, %v361
      %v368 = vadd.f32 %v286, %v357
      %v369 = vadd.f32 %v286, %v361
      %v370 = vadd.f32 %v291, %v357
      %v371 = vadd.f32 %v291, %v361
      %v372 = vadd.f32 %v296, %v357
      %v373 = vadd.f32 %v296, %v361
      %v374 = vadd.f32 %v301, %v357
      %v375 = vadd.f32 %v301, %v361
      %v376 = vadd.f32 %v306, %v357
      %v377 = vadd.f32 %v306, %v361
      %v378 = vadd.f32 %v311, %v357
      %v379 = vadd.f32 %v311, %v361
      %v380 = vadd.f32 %v316, %v357
      %v381 = vadd.f32 %v316, %v361
      %v382 = vadd.f32 %v321, %v357
      %v383 = vadd.f32 %v321, %v361
      %v384 = vadd.f32 %v326, %v357
      %v385 = vadd.f32 %v326, %v361
      %v386 = vadd.f32 %v331, %v357
      %v387 = vadd.f32 %v331, %v361
      %v388 = vadd.f32 %v336, %v357
      %v389 = vadd.f32 %v336, %v361
      %v390 = vadd.f32 %v341, %v357
      %v391 = vadd.f32 %v341, %v361
      %v392 = vadd.f32 %v346, %v357
      %v393 = vadd.f32 %v346, %v361
      %v394 = vadd.f32 %v351, %v357
      %v395 = vadd.f32 %v351, %v361
      %v396 = vld [vmem:[%s239] sm:$0xff]
      %v397 = vld [vmem:[%s239 + $0x8] sm:$0xff]
      %v398 = vld [vmem:[%s239 + $0x10] sm:$0xff]
      %v399 = vld [vmem:[%s239 + $0x18] sm:$0xff]
      %v400 = vld [vmem:[%s239 + $0x20] sm:$0xff]
      %v401 = vld [vmem:[%s239 + $0x28] sm:$0xff]
      %v402 = vld [vmem:[%s239 + $0x30] sm:$0xff]
      %v403 = vld [vmem:[%s239 + $0x38] sm:$0xff]
      %vm404 = vnez %v396
      %vm405 = vnez %v397
      %vm406 = vnez %v398
      %vm407 = vnez %v399
      %vm408 = vnez %v400
      %vm409 = vnez %v401
      %vm410 = vnez %v402
      %vm411 = vnez %v403
      %v412 = vmul.f32 %v364, 0.2
      %v413 = vmul.f32 %v365, 0.2
      %v414 = vmul.f32 %v366, 0.2
      %v415 = vmul.f32 %v367, 0.2
      %v416 = vmul.f32 %v368, 0.2
      %v417 = vmul.f32 %v369, 0.2
      %v418 = vmul.f32 %v370, 0.2
      %v419 = vmul.f32 %v371, 0.2
      %v420 = vmul.f32 %v372, 0.2
      %v421 = vmul.f32 %v373, 0.2
      %v422 = vmul.f32 %v374, 0.2
      %v423 = vmul.f32 %v375, 0.2
      %v424 = vmul.f32 %v376, 0.2
      %v425 = vmul.f32 %v377, 0.2
      %v426 = vmul.f32 %v378, 0.2
      %v427 = vmul.f32 %v379, 0.2
      %v428 = vmul.f32 %v380, 0.2
      %v429 = vmul.f32 %v381, 0.2
      %v430 = vmul.f32 %v382, 0.2
      %v431 = vmul.f32 %v383, 0.2
      %v432 = vmul.f32 %v384, 0.2
      %v433 = vmul.f32 %v385, 0.2
      %v434 = vmul.f32 %v386, 0.2
      %v435 = vmul.f32 %v387, 0.2
      %v436 = vmul.f32 %v388, 0.2
      %v437 = vmul.f32 %v389, 0.2
      %v438 = vmul.f32 %v390, 0.2
      %v439 = vmul.f32 %v391, 0.2
      %v440 = vmul.f32 %v392, 0.2
      %v441 = vmul.f32 %v393, 0.2
      %v442 = vmul.f32 %v394, 0.2
      %v443 = vmul.f32 %v395, 0.2
      %v444 = vmax.f32 %v364, %v412
      %v445 = vmax.f32 %v365, %v413
      %v446 = vmax.f32 %v366, %v414
      %v447 = vmax.f32 %v367, %v415
      %v448 = vmax.f32 %v368, %v416
      %v449 = vmax.f32 %v369, %v417
      %v450 = vmax.f32 %v370, %v418
      %v451 = vmax.f32 %v371, %v419
      %v452 = vmax.f32 %v372, %v420
      %v453 = vmax.f32 %v373, %v421
      %v454 = vmax.f32 %v374, %v422
      %v455 = vmax.f32 %v375, %v423
      %v456 = vmax.f32 %v376, %v424
      %v457 = vmax.f32 %v377, %v425
      %v458 = vmax.f32 %v378, %v426
      %v459 = vmax.f32 %v379, %v427
      %v460 = vmax.f32 %v380, %v428
      %v461 = vmax.f32 %v381, %v429
      %v462 = vmax.f32 %v382, %v430
      %v463 = vmax.f32 %v383, %v431
      %v464 = vmax.f32 %v384, %v432
      %v465 = vmax.f32 %v385, %v433
      %v466 = vmax.f32 %v386, %v434
      %v467 = vmax.f32 %v387, %v435
      %v468 = vmax.f32 %v388, %v436
      %v469 = vmax.f32 %v389, %v437
      %v470 = vmax.f32 %v390, %v438
      %v471 = vmax.f32 %v391, %v439
      %v472 = vmax.f32 %v392, %v440
      %v473 = vmax.f32 %v393, %v441
      %v474 = vmax.f32 %v394, %v442
      %v475 = vmax.f32 %v395, %v443
      %v476 = vsel %vm404, 16843009, 0
      %v477 = vsel %vm405, 16843009, 0
      %v478 = vsel %vm406, 16843009, 0
      %v479 = vsel %vm407, 16843009, 0
      %v480 = vsel %vm408, 16843009, 0
      %v481 = vsel %vm409, 16843009, 0
      %v482 = vsel %vm410, 16843009, 0
      %v483 = vsel %vm411, 16843009, 0
      %v484 = vunpack.c.0.s8 %v476
      %v485 = vunpack.c.0.s8 %v477
      %v486 = vunpack.c.1.s8 %v476
      %v487 = vunpack.c.1.s8 %v477
      %v488 = vunpack.c.2.s8 %v476
      %v489 = vunpack.c.2.s8 %v477
      %v490 = vunpack.c.3.s8 %v476
      %v491 = vunpack.c.3.s8 %v477
      %v492 = vunpack.c.0.s8 %v478
      %v493 = vunpack.c.0.s8 %v479
      %v494 = vunpack.c.1.s8 %v478
      %v495 = vunpack.c.1.s8 %v479
      %v496 = vunpack.c.2.s8 %v478
      %v497 = vunpack.c.2.s8 %v479
      %v498 = vunpack.c.3.s8 %v478
      %v499 = vunpack.c.3.s8 %v479
      %v500 = vunpack.c.0.s8 %v480
      %v501 = vunpack.c.0.s8 %v481
      %v502 = vunpack.c.1.s8 %v480
      %v503 = vunpack.c.1.s8 %v481
      %v504 = vunpack.c.2.s8 %v480
      %v505 = vunpack.c.2.s8 %v481
      %v506 = vunpack.c.3.s8 %v480
      %v507 = vunpack.c.3.s8 %v481
      %v508 = vunpack.c.0.s8 %v482
      %v509 = vunpack.c.0.s8 %v483
      %v510 = vunpack.c.1.s8 %v482
      %v511 = vunpack.c.1.s8 %v483
      %v512 = vunpack.c.2.s8 %v482
      %v513 = vunpack.c.2.s8 %v483
      %v514 = vunpack.c.3.s8 %v482
      %v515 = vunpack.c.3.s8 %v483
      %v516 = vpack.c.b16 %v485, %v484
      %v517 = vpack.c.b8 %v516, %v516
      %v518 = vpack.c.b16 %v487, %v486
      %v519 = vpack.c.b8 %v518, %v518
      %v520 = vpack.c.b16 %v489, %v488
      %v521 = vpack.c.b8 %v520, %v520
      %v522 = vpack.c.b16 %v491, %v490
      %v523 = vpack.c.b8 %v522, %v522
      %v524 = vpack.c.b16 %v493, %v492
      %v525 = vpack.c.b8 %v524, %v524
      %v526 = vpack.c.b16 %v495, %v494
      %v527 = vpack.c.b8 %v526, %v526
      %v528 = vpack.c.b16 %v497, %v496
      %v529 = vpack.c.b8 %v528, %v528
      %v530 = vpack.c.b16 %v499, %v498
      %v531 = vpack.c.b8 %v530, %v530
      %v532 = vpack.c.b16 %v501, %v500
      %v533 = vpack.c.b8 %v532, %v532
      %v534 = vpack.c.b16 %v503, %v502
      %v535 = vpack.c.b8 %v534, %v534
      %v536 = vpack.c.b16 %v505, %v504
      %v537 = vpack.c.b8 %v536, %v536
      %v538 = vpack.c.b16 %v507, %v506
      %v539 = vpack.c.b8 %v538, %v538
      %v540 = vpack.c.b16 %v509, %v508
      %v541 = vpack.c.b8 %v540, %v540
      %v542 = vpack.c.b16 %v511, %v510
      %v543 = vpack.c.b8 %v542, %v542
      %v544 = vpack.c.b16 %v513, %v512
      %v545 = vpack.c.b8 %v544, %v544
      %v546 = vpack.c.b16 %v515, %v514
      %v547 = vpack.c.b8 %v546, %v546
      %vm548 = vnez %v517
      %vm549 = vnez %v519
      %vm550 = vnez %v521
      %vm551 = vnez %v523
      %vm552 = vnez %v525
      %vm553 = vnez %v527
      %vm554 = vnez %v529
      %vm555 = vnez %v531
      %vm556 = vnez %v533
      %vm557 = vnez %v535
      %vm558 = vnez %v537
      %vm559 = vnez %v539
      %vm560 = vnez %v541
      %vm561 = vnez %v543
      %vm562 = vnez %v545
      %vm563 = vnez %v547
      %v564 = vsel %vm548, 16843009, 0
      %v565 = vsel %vm549, 16843009, 0
      %v566 = vsel %vm550, 16843009, 0
      %v567 = vsel %vm551, 16843009, 0
      %v568 = vsel %vm552, 16843009, 0
      %v569 = vsel %vm553, 16843009, 0
      %v570 = vsel %vm554, 16843009, 0
      %v571 = vsel %vm555, 16843009, 0
      %v572 = vsel %vm556, 16843009, 0
      %v573 = vsel %vm557, 16843009, 0
      %v574 = vsel %vm558, 16843009, 0
      %v575 = vsel %vm559, 16843009, 0
      %v576 = vsel %vm560, 16843009, 0
      %v577 = vsel %vm561, 16843009, 0
      %v578 = vsel %vm562, 16843009, 0
      %v579 = vsel %vm563, 16843009, 0
      %v580 = vunpack.c.0.s8 %v564
      %v581 = vunpack.c.1.s8 %v564
      %v582 = vunpack.c.0.s8 %v565
      %v583 = vunpack.c.1.s8 %v565
      %v584 = vunpack.c.0.s8 %v566
      %v585 = vunpack.c.1.s8 %v566
      %v586 = vunpack.c.0.s8 %v567
      %v587 = vunpack.c.1.s8 %v567
      %v588 = vunpack.c.0.s8 %v568
      %v589 = vunpack.c.1.s8 %v568
      %v590 = vunpack.c.0.s8 %v569
      %v591 = vunpack.c.1.s8 %v569
      %v592 = vunpack.c.0.s8 %v570
      %v593 = vunpack.c.1.s8 %v570
      %v594 = vunpack.c.0.s8 %v571
      %v595 = vunpack.c.1.s8 %v571
      %v596 = vunpack.c.0.s8 %v572
      %v597 = vunpack.c.1.s8 %v572
      %v598 = vunpack.c.0.s8 %v573
      %v599 = vunpack.c.1.s8 %v573
      %v600 = vunpack.c.0.s8 %v574
      %v601 = vunpack.c.1.s8 %v574
      %v602 = vunpack.c.0.s8 %v575
      %v603 = vunpack.c.1.s8 %v575
      %v604 = vunpack.c.0.s8 %v576
      %v605 = vunpack.c.1.s8 %v576
      %v606 = vunpack.c.0.s8 %v577
      %v607 = vunpack.c.1.s8 %v577
      %v608 = vunpack.c.0.s8 %v578
      %v609 = vunpack.c.1.s8 %v578
      %v610 = vunpack.c.0.s8 %v579
      %v611 = vunpack.c.1.s8 %v579
      %vm612 = vcmp.ne.s32.totalorder %v580, 0
      %vm613 = vcmp.ne.s32.totalorder %v581, 0
      %vm614 = vcmp.ne.s32.totalorder %v582, 0
      %vm615 = vcmp.ne.s32.totalorder %v583, 0
      %vm616 = vcmp.ne.s32.totalorder %v584, 0
      %vm617 = vcmp.ne.s32.totalorder %v585, 0
      %vm618 = vcmp.ne.s32.totalorder %v586, 0
      %vm619 = vcmp.ne.s32.totalorder %v587, 0
      %vm620 = vcmp.ne.s32.totalorder %v588, 0
      %vm621 = vcmp.ne.s32.totalorder %v589, 0
      %vm622 = vcmp.ne.s32.totalorder %v590, 0
      %vm623 = vcmp.ne.s32.totalorder %v591, 0
      %vm624 = vcmp.ne.s32.totalorder %v592, 0
      %vm625 = vcmp.ne.s32.totalorder %v593, 0
      %vm626 = vcmp.ne.s32.totalorder %v594, 0
      %vm627 = vcmp.ne.s32.totalorder %v595, 0
      %vm628 = vcmp.ne.s32.totalorder %v596, 0
      %vm629 = vcmp.ne.s32.totalorder %v597, 0
      %vm630 = vcmp.ne.s32.totalorder %v598, 0
      %vm631 = vcmp.ne.s32.totalorder %v599, 0
      %vm632 = vcmp.ne.s32.totalorder %v600, 0
      %vm633 = vcmp.ne.s32.totalorder %v601, 0
      %vm634 = vcmp.ne.s32.totalorder %v602, 0
      %vm635 = vcmp.ne.s32.totalorder %v603, 0
      %vm636 = vcmp.ne.s32.totalorder %v604, 0
      %vm637 = vcmp.ne.s32.totalorder %v605, 0
      %vm638 = vcmp.ne.s32.totalorder %v606, 0
      %vm639 = vcmp.ne.s32.totalorder %v607, 0
      %vm640 = vcmp.ne.s32.totalorder %v608, 0
      %vm641 = vcmp.ne.s32.totalorder %v609, 0
      %vm642 = vcmp.ne.s32.totalorder %v610, 0
      %vm643 = vcmp.ne.s32.totalorder %v611, 0
      %v644 = vsel %vm612, %v444, -1e+30
      %v645 = vsel %vm613, %v445, -1e+30
      %v646 = vsel %vm614, %v446, -1e+30
      %v647 = vsel %vm615, %v447, -1e+30
      %v648 = vsel %vm616, %v448, -1e+30
      %v649 = vsel %vm617, %v449, -1e+30
      %v650 = vsel %vm618, %v450, -1e+30
      %v651 = vsel %vm619, %v451, -1e+30
      %v652 = vsel %vm620, %v452, -1e+30
      %v653 = vsel %vm621, %v453, -1e+30
      %v654 = vsel %vm622, %v454, -1e+30
      %v655 = vsel %vm623, %v455, -1e+30
      %v656 = vsel %vm624, %v456, -1e+30
      %v657 = vsel %vm625, %v457, -1e+30
      %v658 = vsel %vm626, %v458, -1e+30
      %v659 = vsel %vm627, %v459, -1e+30
      %v660 = vsel %vm628, %v460, -1e+30
      %v661 = vsel %vm629, %v461, -1e+30
      %v662 = vsel %vm630, %v462, -1e+30
      %v663 = vsel %vm631, %v463, -1e+30
      %v664 = vsel %vm632, %v464, -1e+30
      %v665 = vsel %vm633, %v465, -1e+30
      %v666 = vsel %vm634, %v466, -1e+30
      %v667 = vsel %vm635, %v467, -1e+30
      %v668 = vsel %vm636, %v468, -1e+30
      %v669 = vsel %vm637, %v469, -1e+30
      %v670 = vsel %vm638, %v470, -1e+30
      %v671 = vsel %vm639, %v471, -1e+30
      %v672 = vsel %vm640, %v472, -1e+30
      %v673 = vsel %vm641, %v473, -1e+30
      %v674 = vsel %vm642, %v474, -1e+30
      %v675 = vsel %vm643, %v475, -1e+30
      %v676 = vmax.f32 %v644, %v645
      %677 = vmax.xlane.f32.xlu0 %v676
      %v678 = vpop.xlane.xlu0 %677
      %v679 = vmax.f32 %v646, %v647
      %680 = vmax.xlane.f32.xlu0 %v679
      %v681 = vpop.xlane.xlu0 %680
      %v682 = vmax.f32 %v648, %v649
      %683 = vmax.xlane.f32.xlu0 %v682
      %v684 = vpop.xlane.xlu0 %683
      %v685 = vmax.f32 %v650, %v651
      %686 = vmax.xlane.f32.xlu0 %v685
      %v687 = vpop.xlane.xlu0 %686
      %v688 = vmax.f32 %v652, %v653
      %689 = vmax.xlane.f32.xlu0 %v688
      %v690 = vpop.xlane.xlu0 %689
      %v691 = vmax.f32 %v654, %v655
      %692 = vmax.xlane.f32.xlu0 %v691
      %v693 = vpop.xlane.xlu0 %692
      %v694 = vmax.f32 %v656, %v657
      %695 = vmax.xlane.f32.xlu0 %v694
      %v696 = vpop.xlane.xlu0 %695
      %v697 = vmax.f32 %v658, %v659
      %698 = vmax.xlane.f32.xlu0 %v697
      %v699 = vpop.xlane.xlu0 %698
      %v700 = vmax.f32 %v660, %v661
      %701 = vmax.xlane.f32.xlu0 %v700
      %v702 = vpop.xlane.xlu0 %701
      %v703 = vmax.f32 %v662, %v663
      %704 = vmax.xlane.f32.xlu0 %v703
      %v705 = vpop.xlane.xlu0 %704
      %v706 = vmax.f32 %v664, %v665
      %707 = vmax.xlane.f32.xlu0 %v706
      %v708 = vpop.xlane.xlu0 %707
      %v709 = vmax.f32 %v666, %v667
      %710 = vmax.xlane.f32.xlu0 %v709
      %v711 = vpop.xlane.xlu0 %710
      %v712 = vmax.f32 %v668, %v669
      %713 = vmax.xlane.f32.xlu0 %v712
      %v714 = vpop.xlane.xlu0 %713
      %v715 = vmax.f32 %v670, %v671
      %716 = vmax.xlane.f32.xlu0 %v715
      %v717 = vpop.xlane.xlu0 %716
      %v718 = vmax.f32 %v672, %v673
      %719 = vmax.xlane.f32.xlu0 %v718
      %v720 = vpop.xlane.xlu0 %719
      %v721 = vmax.f32 %v674, %v675
      %722 = vmax.xlane.f32.xlu0 %v721
      %v723 = vpop.xlane.xlu0 %722
      %v724 = vsub.f32 %v644, %v678
      %v725 = vsub.f32 %v645, %v678
      %v726 = vsub.f32 %v646, %v681
      %v727 = vsub.f32 %v647, %v681
      %v728 = vsub.f32 %v648, %v684
      %v729 = vsub.f32 %v649, %v684
      %v730 = vsub.f32 %v650, %v687
      %v731 = vsub.f32 %v651, %v687
      %v732 = vsub.f32 %v652, %v690
      %v733 = vsub.f32 %v653, %v690
      %v734 = vsub.f32 %v654, %v693
      %v735 = vsub.f32 %v655, %v693
      %v736 = vsub.f32 %v656, %v696
      %v737 = vsub.f32 %v657, %v696
      %v738 = vsub.f32 %v658, %v699
      %v739 = vsub.f32 %v659, %v699
      %v740 = vsub.f32 %v660, %v702
      %v741 = vsub.f32 %v661, %v702
      %v742 = vsub.f32 %v662, %v705
      %v743 = vsub.f32 %v663, %v705
      %v744 = vsub.f32 %v664, %v708
      %v745 = vsub.f32 %v665, %v708
      %v746 = vsub.f32 %v666, %v711
      %v747 = vsub.f32 %v667, %v711
      %v748 = vsub.f32 %v668, %v714
      %v749 = vsub.f32 %v669, %v714
      %v750 = vsub.f32 %v670, %v717
      %v751 = vsub.f32 %v671, %v717
      %v752 = vsub.f32 %v672, %v720
      %v753 = vsub.f32 %v673, %v720
      %v754 = vsub.f32 %v674, %v723
      %v755 = vsub.f32 %v675, %v723
      %v756 = vmul.f32 %v724, 1.442695
      %v757 = vpow.pop %v756
      %v758 = vmul.f32 %v725, 1.442695
      %v759 = vpow.pop %v758
      %v760 = vmul.f32 %v726, 1.442695
      %v761 = vpow.pop %v760
      %v762 = vmul.f32 %v727, 1.442695
      %v763 = vpow.pop %v762
      %v764 = vmul.f32 %v728, 1.442695
      %v765 = vpow.pop %v764
      %v766 = vmul.f32 %v729, 1.442695
      %v767 = vpow.pop %v766
      %v768 = vmul.f32 %v730, 1.442695
      %v769 = vpow.pop %v768
      %v770 = vmul.f32 %v731, 1.442695
      %v771 = vpow.pop %v770
      %v772 = vmul.f32 %v732, 1.442695
      %v773 = vpow.pop %v772
      %v774 = vmul.f32 %v733, 1.442695
      %v775 = vpow.pop %v774
      %v776 = vmul.f32 %v734, 1.442695
      %v777 = vpow.pop %v776
      %v778 = vmul.f32 %v735, 1.442695
      %v779 = vpow.pop %v778
      %v780 = vmul.f32 %v736, 1.442695
      %v781 = vpow.pop %v780
      %v782 = vmul.f32 %v737, 1.442695
      %v783 = vpow.pop %v782
      %v784 = vmul.f32 %v738, 1.442695
      %v785 = vpow.pop %v784
      %v786 = vmul.f32 %v739, 1.442695
      %v787 = vpow.pop %v786
      %v788 = vmul.f32 %v740, 1.442695
      %v789 = vpow.pop %v788
      %v790 = vmul.f32 %v741, 1.442695
      %v791 = vpow.pop %v790
      %v792 = vmul.f32 %v742, 1.442695
      %v793 = vpow.pop %v792
      %v794 = vmul.f32 %v743, 1.442695
      %v795 = vpow.pop %v794
      %v796 = vmul.f32 %v744, 1.442695
      %v797 = vpow.pop %v796
      %v798 = vmul.f32 %v745, 1.442695
      %v799 = vpow.pop %v798
      %v800 = vmul.f32 %v746, 1.442695
      %v801 = vpow.pop %v800
      %v802 = vmul.f32 %v747, 1.442695
      %v803 = vpow.pop %v802
      %v804 = vmul.f32 %v748, 1.442695
      %v805 = vpow.pop %v804
      %v806 = vmul.f32 %v749, 1.442695
      %v807 = vpow.pop %v806
      %v808 = vmul.f32 %v750, 1.442695
      %v809 = vpow.pop %v808
      %v810 = vmul.f32 %v751, 1.442695
      %v811 = vpow.pop %v810
      %v812 = vmul.f32 %v752, 1.442695
      %v813 = vpow.pop %v812
      %v814 = vmul.f32 %v753, 1.442695
      %v815 = vpow.pop %v814
      %v816 = vmul.f32 %v754, 1.442695
      %v817 = vpow.pop %v816
      %v818 = vmul.f32 %v755, 1.442695
      %v819 = vpow.pop %v818
      %v820 = vadd.f32 %v757, %v759
      %821 = vadd.xlane.f32.xlu0 %v820
      %v822 = vpop.xlane.xlu0 %821
      %v823 = vadd.f32 %v761, %v763
      %824 = vadd.xlane.f32.xlu0 %v823
      %v825 = vpop.xlane.xlu0 %824
      %v826 = vadd.f32 %v765, %v767
      %827 = vadd.xlane.f32.xlu0 %v826
      %v828 = vpop.xlane.xlu0 %827
      %v829 = vadd.f32 %v769, %v771
      %830 = vadd.xlane.f32.xlu0 %v829
      %v831 = vpop.xlane.xlu0 %830
      %v832 = vadd.f32 %v773, %v775
      %833 = vadd.xlane.f32.xlu0 %v832
      %v834 = vpop.xlane.xlu0 %833
      %v835 = vadd.f32 %v777, %v779
      %836 = vadd.xlane.f32.xlu0 %v835
      %v837 = vpop.xlane.xlu0 %836
      %v838 = vadd.f32 %v781, %v783
      %839 = vadd.xlane.f32.xlu0 %v838
      %v840 = vpop.xlane.xlu0 %839
      %v841 = vadd.f32 %v785, %v787
      %842 = vadd.xlane.f32.xlu0 %v841
      %v843 = vpop.xlane.xlu0 %842
      %v844 = vadd.f32 %v789, %v791
      %845 = vadd.xlane.f32.xlu0 %v844
      %v846 = vpop.xlane.xlu0 %845
      %v847 = vadd.f32 %v793, %v795
      %848 = vadd.xlane.f32.xlu0 %v847
      %v849 = vpop.xlane.xlu0 %848
      %v850 = vadd.f32 %v797, %v799
      %851 = vadd.xlane.f32.xlu0 %v850
      %v852 = vpop.xlane.xlu0 %851
      %v853 = vadd.f32 %v801, %v803
      %854 = vadd.xlane.f32.xlu0 %v853
      %v855 = vpop.xlane.xlu0 %854
      %v856 = vadd.f32 %v805, %v807
      %857 = vadd.xlane.f32.xlu0 %v856
      %v858 = vpop.xlane.xlu0 %857
      %v859 = vadd.f32 %v809, %v811
      %860 = vadd.xlane.f32.xlu0 %v859
      %v861 = vpop.xlane.xlu0 %860
      %v862 = vadd.f32 %v813, %v815
      %863 = vadd.xlane.f32.xlu0 %v862
      %v864 = vpop.xlane.xlu0 %863
      %v865 = vadd.f32 %v817, %v819
      %866 = vadd.xlane.f32.xlu0 %v865
      %v867 = vpop.xlane.xlu0 %866
      %v868 = vpack.c.bf16 %v761, %v757
      %v869 = vpack.c.bf16 %v763, %v759
      %v870 = vpack.c.bf16 %v769, %v765
      %v871 = vpack.c.bf16 %v771, %v767
      %v872 = vpack.c.bf16 %v777, %v773
      %v873 = vpack.c.bf16 %v779, %v775
      %v874 = vpack.c.bf16 %v785, %v781
      %v875 = vpack.c.bf16 %v787, %v783
      %v876 = vpack.c.bf16 %v793, %v789
      %v877 = vpack.c.bf16 %v795, %v791
      %v878 = vpack.c.bf16 %v801, %v797
      %v879 = vpack.c.bf16 %v803, %v799
      %v880 = vpack.c.bf16 %v809, %v805
      %v881 = vpack.c.bf16 %v811, %v807
      %v882 = vpack.c.bf16 %v817, %v813
      %v883 = vpack.c.bf16 %v819, %v815
      %v884 = vld [vmem:[%s3] sm:$0xf]
      %v885 = vld [vmem:[%s3 + $0x4] sm:$0xf]
      %v886 = vld [vmem:[%s3 + $0x8] sm:$0xf]
      %v887 = vld [vmem:[%s3 + $0xc] sm:$0xf]
      %v888 = vld [vmem:[%s3 + $0x10] sm:$0xf]
      %v889 = vld [vmem:[%s3 + $0x14] sm:$0xf]
      %v890 = vld [vmem:[%s3 + $0x18] sm:$0xf]
      %v891 = vld [vmem:[%s3 + $0x1c] sm:$0xf]
      %v892 = vld [vmem:[%s3 + $0x20] sm:$0xf]
      %v893 = vld [vmem:[%s3 + $0x24] sm:$0xf]
      %v894 = vld [vmem:[%s3 + $0x28] sm:$0xf]
      %v895 = vld [vmem:[%s3 + $0x2c] sm:$0xf]
      %v896 = vld [vmem:[%s3 + $0x30] sm:$0xf]
      %v897 = vld [vmem:[%s3 + $0x34] sm:$0xf]
      %v898 = vld [vmem:[%s3 + $0x38] sm:$0xf]
      %v899 = vld [vmem:[%s3 + $0x3c] sm:$0xf]
      %v900 = vld [vmem:[%s3 + $0x40] sm:$0xf]
      %v901 = vld [vmem:[%s3 + $0x44] sm:$0xf]
      %v902 = vld [vmem:[%s3 + $0x48] sm:$0xf]
      %v903 = vld [vmem:[%s3 + $0x4c] sm:$0xf]
      %v904 = vld [vmem:[%s3 + $0x50] sm:$0xf]
      %v905 = vld [vmem:[%s3 + $0x54] sm:$0xf]
      %v906 = vld [vmem:[%s3 + $0x58] sm:$0xf]
      %v907 = vld [vmem:[%s3 + $0x5c] sm:$0xf]
      %v908 = vld [vmem:[%s3 + $0x60] sm:$0xf]
      %v909 = vld [vmem:[%s3 + $0x64] sm:$0xf]
      %v910 = vld [vmem:[%s3 + $0x68] sm:$0xf]
      %v911 = vld [vmem:[%s3 + $0x6c] sm:$0xf]
      %v912 = vld [vmem:[%s3 + $0x70] sm:$0xf]
      %v913 = vld [vmem:[%s3 + $0x74] sm:$0xf]
      %v914 = vld [vmem:[%s3 + $0x78] sm:$0xf]
      %v915 = vld [vmem:[%s3 + $0x7c] sm:$0xf]
      %v948 = vunpack.c.l.b16 %v884
      %v949 = vunpack.c.l.b16 %v885
      %v950 = vunpack.c.l.b16 %v886
      %v951 = vunpack.c.l.b16 %v887
      %v952 = vunpack.c.l.b16 %v888
      %v953 = vunpack.c.l.b16 %v889
      %v954 = vunpack.c.l.b16 %v890
      %v955 = vunpack.c.l.b16 %v891
      %v956 = vunpack.c.l.b16 %v892
      %v957 = vunpack.c.l.b16 %v893
      %v958 = vunpack.c.l.b16 %v894
      %v959 = vunpack.c.l.b16 %v895
      %v960 = vunpack.c.l.b16 %v896
      %v961 = vunpack.c.l.b16 %v897
      %v962 = vunpack.c.l.b16 %v898
      %v963 = vunpack.c.l.b16 %v899
      %v964 = vunpack.c.l.b16 %v900
      %v965 = vunpack.c.l.b16 %v901
      %v966 = vunpack.c.l.b16 %v902
      %v967 = vunpack.c.l.b16 %v903
      %v968 = vunpack.c.l.b16 %v904
      %v969 = vunpack.c.l.b16 %v905
      %v970 = vunpack.c.l.b16 %v906
      %v971 = vunpack.c.l.b16 %v907
      %v972 = vunpack.c.l.b16 %v908
      %v973 = vunpack.c.l.b16 %v909
      %v974 = vunpack.c.l.b16 %v910
      %v975 = vunpack.c.l.b16 %v911
      %v976 = vunpack.c.l.b16 %v912
      %v977 = vunpack.c.l.b16 %v913
      %v978 = vunpack.c.l.b16 %v914
      %v979 = vunpack.c.l.b16 %v915
      %v980 = vpack.c.b16 %v949, %v948
      %v981 = vpack.c.b16 %v951, %v950
      %v982 = vpack.c.b16 %v953, %v952
      %v983 = vpack.c.b16 %v955, %v954
      %v984 = vpack.c.b16 %v957, %v956
      %v985 = vpack.c.b16 %v959, %v958
      %v986 = vpack.c.b16 %v961, %v960
      %v987 = vpack.c.b16 %v963, %v962
      %v988 = vpack.c.b16 %v965, %v964
      %v989 = vpack.c.b16 %v967, %v966
      %v990 = vpack.c.b16 %v969, %v968
      %v991 = vpack.c.b16 %v971, %v970
      %v992 = vpack.c.b16 %v973, %v972
      %v993 = vpack.c.b16 %v975, %v974
      %v994 = vpack.c.b16 %v977, %v976
      %v995 = vpack.c.b16 %v979, %v978
      %1012 = vmatprep.subr.bf16.mxu0 0
      %1013 = vmatpush1.bf16.msra.mxu0 %v987
      %1014 = vmatprep.subr.bf16.mxu0 0
      %1015 = vmatpush1.bf16.msra.mxu0 %v986
      %1016 = vmatprep.subr.bf16.mxu0 0
      %1017 = vmatpush1.bf16.msra.mxu0 %v985
      %1018 = vmatprep.subr.bf16.mxu0 0
      %1019 = vmatpush1.bf16.msra.mxu0 %v984
      %1020 = vmatprep.subr.bf16.mxu0 0
      %1021 = vmatpush1.bf16.msra.mxu0 %v983
      %1022 = vmatprep.subr.bf16.mxu0 0
      %1023 = vmatpush1.bf16.msra.mxu0 %v982
      %1024 = vmatprep.subr.bf16.mxu0 0
      %1025 = vmatpush1.bf16.msra.mxu0 %v981
      %1026 = vmatprep.subr.bf16.mxu0 0
      %1027 = vmatpush1.bf16.msra.mxu0 %v980
      %1028 = vmatprep.subr.bf16.mxu0 0
      %1029 = vmatpush2.bf16.msra.mxu0 %v995
      %1030 = vmatprep.subr.bf16.mxu0 0
      %1031 = vmatpush2.bf16.msra.mxu0 %v994
      %1032 = vmatprep.subr.bf16.mxu0 0
      %1033 = vmatpush2.bf16.msra.mxu0 %v993
      %1034 = vmatprep.subr.bf16.mxu0 0
      %1035 = vmatpush2.bf16.msra.mxu0 %v992
      %1036 = vmatprep.subr.bf16.mxu0 0
      %1037 = vmatpush2.bf16.msra.mxu0 %v991
      %1038 = vmatprep.subr.bf16.mxu0 0
      %1039 = vmatpush2.bf16.msra.mxu0 %v990
      %1040 = vmatprep.subr.bf16.mxu0 0
      %1041 = vmatpush2.bf16.msra.mxu0 %v989
      %1042 = vmatprep.subr.bf16.mxu0 0
      %1043 = vmatpush2.bf16.msra.mxu0 %v988
      %1044 = vmatprep.mubr.bf16.mxu0 %v869
      %1045 = vmatmul.mubr.bf16.gmra.mxu0 %v868
      %v1046 = vpop.f32.mrf.mxu0
      %v1047 = vadd.f32 0.0, %v1046
      %v1048 = vpop.f32.mrf.mxu0
      %v1049 = vpop.f32.mrf.mxu0
      %v1050 = vadd.f32 0.0, %v1049
      %v1051 = vpop.f32.mrf.mxu0
      %1052 = vmatprep.mubr.bf16.mxu0 %v871
      %1053 = vmatmul.mubr.bf16.gmra.mxu0 %v870
      %v1054 = vpop.f32.mrf.mxu0
      %v1055 = vadd.f32 0.0, %v1054
      %v1056 = vpop.f32.mrf.mxu0
      %v1057 = vpop.f32.mrf.mxu0
      %v1058 = vadd.f32 0.0, %v1057
      %v1059 = vpop.f32.mrf.mxu0
      %1060 = vmatprep.mubr.bf16.mxu0 %v873
      %1061 = vmatmul.mubr.bf16.gmra.mxu0 %v872
      %v1062 = vpop.f32.mrf.mxu0
      %v1063 = vadd.f32 0.0, %v1062
      %v1064 = vpop.f32.mrf.mxu0
      %v1065 = vpop.f32.mrf.mxu0
      %v1066 = vadd.f32 0.0, %v1065
      %v1067 = vpop.f32.mrf.mxu0
      %1068 = vmatprep.mubr.bf16.mxu0 %v875
      %1069 = vmatmul.mubr.bf16.gmra.mxu0 %v874
      %v1070 = vpop.f32.mrf.mxu0
      %v1071 = vadd.f32 0.0, %v1070
      %v1072 = vpop.f32.mrf.mxu0
      %v1073 = vpop.f32.mrf.mxu0
      %v1074 = vadd.f32 0.0, %v1073
      %v1075 = vpop.f32.mrf.mxu0
      %1076 = vmatprep.mubr.bf16.mxu0 %v877
      %1077 = vmatmul.mubr.bf16.gmra.mxu0 %v876
      %v1078 = vpop.f32.mrf.mxu0
      %v1079 = vadd.f32 0.0, %v1078
      %v1080 = vpop.f32.mrf.mxu0
      %v1081 = vpop.f32.mrf.mxu0
      %v1082 = vadd.f32 0.0, %v1081
      %v1083 = vpop.f32.mrf.mxu0
      %1084 = vmatprep.mubr.bf16.mxu0 %v879
      %1085 = vmatmul.mubr.bf16.gmra.mxu0 %v878
      %v1086 = vpop.f32.mrf.mxu0
      %v1087 = vadd.f32 0.0, %v1086
      %v1088 = vpop.f32.mrf.mxu0
      %v1089 = vpop.f32.mrf.mxu0
      %v1090 = vadd.f32 0.0, %v1089
      %v1091 = vpop.f32.mrf.mxu0
      %1092 = vmatprep.mubr.bf16.mxu0 %v881
      %1093 = vmatmul.mubr.bf16.gmra.mxu0 %v880
      %v1094 = vpop.f32.mrf.mxu0
      %v1095 = vadd.f32 0.0, %v1094
      %v1096 = vpop.f32.mrf.mxu0
      %v1097 = vpop.f32.mrf.mxu0
      %v1098 = vadd.f32 0.0, %v1097
      %v1099 = vpop.f32.mrf.mxu0
      %1100 = vmatprep.mubr.bf16.mxu0 %v883
      %1101 = vmatmul.mubr.bf16.gmra.mxu0 %v882
      %v1102 = vpop.f32.mrf.mxu0
      %v1103 = vadd.f32 0.0, %v1102
      %v1104 = vpop.f32.mrf.mxu0
      %v1105 = vpop.f32.mrf.mxu0
      %v1106 = vadd.f32 0.0, %v1105
      %v1107 = vpop.f32.mrf.mxu0
      %1108 = vdwg.mxu0
      %v1109 = vrcp.pop %v822
      %v1110 = vrcp.pop %v825
      %v1111 = vrcp.pop %v828
      %v1112 = vrcp.pop %v831
      %v1113 = vrcp.pop %v834
      %v1114 = vrcp.pop %v837
      %v1115 = vrcp.pop %v840
      %v1116 = vrcp.pop %v843
      %v1117 = vrcp.pop %v846
      %v1118 = vrcp.pop %v849
      %v1119 = vrcp.pop %v852
      %v1120 = vrcp.pop %v855
      %v1121 = vrcp.pop %v858
      %v1122 = vrcp.pop %v861
      %v1123 = vrcp.pop %v864
      %v1124 = vrcp.pop %v867
      %v1125 = vmul.f32 %v1047, %v1109
      %v1126 = vmul.f32 %v1050, %v1110
      %v1127 = vmul.f32 %v1055, %v1111
      %v1128 = vmul.f32 %v1058, %v1112
      %v1129 = vmul.f32 %v1063, %v1113
      %v1130 = vmul.f32 %v1066, %v1114
      %v1131 = vmul.f32 %v1071, %v1115
      %v1132 = vmul.f32 %v1074, %v1116
      %v1133 = vmul.f32 %v1079, %v1117
      %v1134 = vmul.f32 %v1082, %v1118
      %v1135 = vmul.f32 %v1087, %v1119
      %v1136 = vmul.f32 %v1090, %v1120
      %v1137 = vmul.f32 %v1095, %v1121
      %v1138 = vmul.f32 %v1098, %v1122
      %v1139 = vmul.f32 %v1103, %v1123
      %v1140 = vmul.f32 %v1106, %v1124
      %v1141 = vld [vmem:[%s4] sm:$0x1]
      %v1143 = vlaneseq
      %v1144 = vshrl.u32 %v1143, 7
      %v1145 = vsub.s32 0, %v1144
      %v1146 = vrot.slane %v1141, %v1145
      %v1148 = vadd.f32 %v1125, %v1146
      %v1149 = vadd.f32 %v1126, %v1146
      %v1150 = vadd.f32 %v1127, %v1146
      %v1151 = vadd.f32 %v1128, %v1146
      %v1152 = vadd.f32 %v1129, %v1146
      %v1153 = vadd.f32 %v1130, %v1146
      %v1154 = vadd.f32 %v1131, %v1146
      %v1155 = vadd.f32 %v1132, %v1146
      %v1156 = vadd.f32 %v1133, %v1146
      %v1157 = vadd.f32 %v1134, %v1146
      %v1158 = vadd.f32 %v1135, %v1146
      %v1159 = vadd.f32 %v1136, %v1146
      %v1160 = vadd.f32 %v1137, %v1146
      %v1161 = vadd.f32 %v1138, %v1146
      %v1162 = vadd.f32 %v1139, %v1146
      %v1163 = vadd.f32 %v1140, %v1146
      %v1164 = vmax.f32 %v1148, 0.0
      %v1165 = vmax.f32 %v1149, 0.0
      %v1166 = vmax.f32 %v1150, 0.0
      %v1167 = vmax.f32 %v1151, 0.0
      %v1168 = vmax.f32 %v1152, 0.0
      %v1169 = vmax.f32 %v1153, 0.0
      %v1170 = vmax.f32 %v1154, 0.0
      %v1171 = vmax.f32 %v1155, 0.0
      %v1172 = vmax.f32 %v1156, 0.0
      %v1173 = vmax.f32 %v1157, 0.0
      %v1174 = vmax.f32 %v1158, 0.0
      %v1175 = vmax.f32 %v1159, 0.0
      %v1176 = vmax.f32 %v1160, 0.0
      %v1177 = vmax.f32 %v1161, 0.0
      %v1178 = vmax.f32 %v1162, 0.0
      %v1179 = vmax.f32 %v1163, 0.0
      %1180 = vst [vmem:[%s251] sm:$0xff] %v1164
      %1181 = vst [vmem:[%s251 + $0x8] sm:$0xff] %v1165
      %1182 = vst [vmem:[%s251 + $0x10] sm:$0xff] %v1166
      %1183 = vst [vmem:[%s251 + $0x18] sm:$0xff] %v1167
      %1184 = vst [vmem:[%s251 + $0x20] sm:$0xff] %v1168
      %1185 = vst [vmem:[%s251 + $0x28] sm:$0xff] %v1169
      %1186 = vst [vmem:[%s251 + $0x30] sm:$0xff] %v1170
      %1187 = vst [vmem:[%s251 + $0x38] sm:$0xff] %v1171
      %1188 = vst [vmem:[%s251 + $0x40] sm:$0xff] %v1172
      %1189 = vst [vmem:[%s251 + $0x48] sm:$0xff] %v1173
      %1190 = vst [vmem:[%s251 + $0x50] sm:$0xff] %v1174
      %1191 = vst [vmem:[%s251 + $0x58] sm:$0xff] %v1175
      %1192 = vst [vmem:[%s251 + $0x60] sm:$0xff] %v1176
      %1193 = vst [vmem:[%s251 + $0x68] sm:$0xff] %v1177
      %1194 = vst [vmem:[%s251 + $0x70] sm:$0xff] %v1178
      %1195 = vst [vmem:[%s251 + $0x78] sm:$0xff] %v1179
      %s1196 = smul.u32 16, %s16
      %p1197 = scmp.lt.s32.totalorder %s1196, 31
      %s1198 = scalar_select %p1197, %s1196, 31
      %s1199 = smul.addr %s1198, 8
      %s1200 = scalar_lea.vmem %s5, %s1199
      // Predicated region
      $region41: #{stand_gat1_forward.1} parent=39 // pred_check
        %p1201 = pneg %p149
      $region42: #{stand_gat1_forward.1} parent=39 // pred_check_branch
        %1203 = sbr.rel (%p1201) target = $region44
      $region43: #{stand_gat1_forward.1} parent=39 // pred_region
        %s1204 = smul.u32 16, %s16
      $region44: #{stand_gat1_forward.1} parent=39 // pred_fallthru
        _
    $region40: #{stand_gat1_forward.1} parent=5 // pred_fallthru
      _
    %p1205 = scmp.le.s32.totalorder 2, %s11
    // Predicated region
    $region45: #{stand_gat1_forward.1} parent=5 // pred_check
      %p1206 = pneg %p1205
    $region46: #{stand_gat1_forward.1} parent=5 // pred_check_branch
      %1208 = sbr.rel (%p1206) target = $region48
    $region47: #{stand_gat1_forward.1} parent=5 // pred_region
      %s1209 = ssub.s32 %s11, 2
      // Predicated region
      $region49: #{stand_gat1_forward.1} parent=47 // pred_check
        %p1210 = pneg %p155
      $region50: #{stand_gat1_forward.1} parent=47 // pred_check_branch
        %1212 = sbr.rel (%p1210) target = $region52
      $region51: #{stand_gat1_forward.1} parent=47 // pred_region
        %s1213 = smul.u32 16, %s17
        %p1214 = scmp.lt.s32.totalorder %s1213, 31
        %s1215 = scalar_select %p1214, %s1213, 31
        %s1216 = smul.addr %s1215, 8
        %s1217 = scalar_lea.vmem %s5, %s1216
      $region52: #{stand_gat1_forward.1} parent=47 // pred_fallthru
        _
    $region48: #{stand_gat1_forward.1} parent=5 // pred_fallthru
      _
  $region6: #{stand_gat1_forward.1} parent=0 // loop_footer
    %s15 = sadd.s32 1, %s11
  $region7: #{stand_gat1_forward.1} parent=0 // loop_footer_branch
    %10 = sbr.rel target = $region3
  $region8: #{stand_gat1_forward.1} parent=0 // loop_exit
    _

</llo_original>
